<compile_context>
chip_gen: v5e
topology: v5e:2x2
jax: 0.10.0
libtpu: 0.0.40
codegen_flags: <defaults>
</compile_context>

<pallas_src>
import functools

import jax
import jax.numpy as jnp
from jax.experimental import pallas as pl
from jax.experimental.pallas import tpu as pltpu

EPS = 1e-5


# ----------------------------------------------------------------------------
# Hardware-aware VMEM budget and tile helpers.
# ----------------------------------------------------------------------------
def _vmem_budget():
    """~3/4 of physical VMEM: 48 MiB on v7x, 96 MiB on v5e/v6e."""
    cap = None
    try:
        info = pltpu.get_tpu_info()
        cap = getattr(info, "vmem_capacity_bytes", None)
    except Exception:
        cap = None
    if not cap:
        cap = 64 * 1024 * 1024  # conservative (v7x physical size)
    return int(cap) * 3 // 4


def _tile(dim, desired):
    """Largest 128-multiple <= desired that divides dim, else the full dim."""
    if dim <= desired:
        return dim
    t = (desired // 128) * 128
    while t >= 128:
        if dim % t == 0:
            return t
        t -= 128
    return dim  # no 128-multiple divisor: full-dim block (always legal)


def _select_tiles(n, kdim, fdim, budget, x_resident):
    """Pick (tn, tk) that fit the VMEM budget.  tn capped at fdim/2 where
    possible so >= 2 'parallel' grid steps remain for v7x's 2 TensorCores."""
    tn = _tile(fdim, min(1024, max(fdim // 2, 128)))
    tk = _tile(kdim, 1024)
    for _ in range(16):
        x_b = (2 * n * kdim * 2) if x_resident else (2 * n * tk * 2)
        w_b = 2 * tk * tn * 2
        o_b = 8 * n * tn            # out buffers + f32 accumulator
        if x_b + w_b + o_b <= budget:
            break
        shrunk = False
        if tk >= tn and tk > 128:
            new_tk = _tile(kdim, max(tk // 2, 128))
            if new_tk < tk:
                tk, shrunk = new_tk, True
        if not shrunk and tn > 128:
            new_tn = _tile(fdim, max(tn // 2, 128))
            if new_tn < tn:
                tn, shrunk = new_tn, True
        if not shrunk:
            break
    return tn, tk


def _bn_relu_f32(h, g, b):
    """Folded BatchNorm (batch stats, one-pass) + ReLU, all f32."""
    inv_n = 1.0 / h.shape[0]
    s1 = jnp.sum(h, axis=0, keepdims=True)
    s2 = jnp.sum(h * h, axis=0, keepdims=True)
    mean = s1 * inv_n
    var = s2 * inv_n - mean * mean          # biased variance (PyTorch fwd)
    scale = g * jax.lax.rsqrt(var + EPS)
    shift = b - mean * scale
    return jnp.maximum(h * scale + shift, 0.0)


# ----------------------------------------------------------------------------
# Single fused kernel for small problems (everything resident in VMEM).
# ----------------------------------------------------------------------------
def _fused_kernel(x_ref, w1_ref, g1_ref, b1_ref, w2_ref, g2_ref, b2_ref,
                  w3_ref, o_ref):
    h = jnp.dot(x_ref[...], w1_ref[...], preferred_element_type=jnp.float32)
    h = _bn_relu_f32(h, g1_ref[...], b1_ref[...]).astype(jnp.bfloat16)
    h = jnp.dot(h, w2_ref[...], preferred_element_type=jnp.float32)
    h = _bn_relu_f32(h, g2_ref[...], b2_ref[...]).astype(jnp.bfloat16)
    o_ref[...] = jnp.dot(h, w3_ref[...], preferred_element_type=jnp.float32)


def _fits_fused(n, d_in, d_hid, d_out, budget):
    need = (n * d_in * 2 + d_in * d_hid * 2 + d_hid * d_hid * 2
            + d_hid * d_out * 2 + 4 * d_hid * 4
            + n * d_out * 4 + 2 * n * d_hid * 4)
    return 2 * need <= budget


def _fused_projection(x, p, budget):
    n, d_in = x.shape
    d_hid = p["w1"].shape[1]
    d_out = p["w3"].shape[1]
    cost = pl.CostEstimate(
        flops=int(2 * n * (d_in * d_hid + d_hid * d_hid + d_hid * d_out)
                  + 16 * n * d_hid),
        transcendentals=int(2 * d_hid),
        bytes_accessed=int(x.size * 2 + p["w1"].size * 2 + p["w2"].size * 2
                           + p["w3"].size * 2 + 4 * d_hid * 4 + n * d_out * 4),
    )
    return pl.pallas_call(
        _fused_kernel,
        out_shape=jax.ShapeDtypeStruct((n, d_out), jnp.float32),
        compiler_params=pltpu.CompilerParams(vmem_limit_bytes=budget),
        cost_estimate=cost,
    )(x, p["w1"], p["g1"], p["b1"], p["w2"], p["g2"], p["b2"], p["w3"])


# ----------------------------------------------------------------------------
# Tiled fused Linear (no bias) -> BatchNorm1d (batch stats) -> ReLU.
# grid = (feature_tiles, k_tiles); activations resident (streamed once).
# ----------------------------------------------------------------------------
def _linear_bn_relu_kernel(x_ref, w_ref, g_ref, b_ref, o_ref, acc_ref,
                           *, tk, x_resident):
    k = pl.program_id(1)

    @pl.when(k == 0)
    def _():
        acc_ref[...] = jnp.zeros_like(acc_ref)

    if x_resident:
        start = pl.multiple_of(k * tk, tk)
        x_chunk = x_ref[:, pl.ds(start, tk)]
    else:
        x_chunk = x_ref[...]
    acc_ref[...] += jnp.dot(x_chunk, w_ref[...],
                            preferred_element_type=jnp.float32)

    @pl.when(k == pl.num_programs(1) - 1)
    def _():
        h = acc_ref[...]
        o_ref[...] = _bn_relu_f32(h, g_ref[...], b_ref[...]).astype(o_ref.dtype)


def _linear_bn_relu(x, w, g, b, *, budget):
    n, kdim = x.shape
    _, fdim = w.shape
    x_resident = 2 * n * kdim * x.dtype.itemsize <= budget // 3
    tn, tk = _select_tiles(n, kdim, fdim, budget, x_resident)
    grid = (fdim // tn, kdim // tk)

    x_reads = 1 if x_resident else (fdim // tn)
    cost = pl.CostEstimate(
        flops=int(2 * n * kdim * fdim + 8 * n * fdim),
        transcendentals=int(fdim),
        bytes_accessed=int(x_reads * x.size * x.dtype.itemsize
                           + w.size * w.dtype.itemsize
                           + g.size * 4 + b.size * 4 + n * fdim * 2),
    )

    if x_resident:
        x_spec = pl.BlockSpec((n, kdim), lambda j, k: (0, 0))  # streamed once
    else:
        x_spec = pl.BlockSpec((n, tk), lambda j, k: (0, k))

    kernel = functools.partial(_linear_bn_relu_kernel, tk=tk,
                               x_resident=x_resident)

    return pl.pallas_call(
        kernel,
        out_shape=jax.ShapeDtypeStruct((n, fdim), jnp.bfloat16),
        grid_spec=pltpu.PrefetchScalarGridSpec(
            num_scalar_prefetch=0,
            grid=grid,
            in_specs=[
                x_spec,
                pl.BlockSpec((tk, tn), lambda j, k: (k, j)),   # weight
                pl.BlockSpec((1, tn), lambda j, k: (0, j)),    # BN gamma
                pl.BlockSpec((1, tn), lambda j, k: (0, j)),    # BN beta
            ],
            out_specs=pl.BlockSpec((n, tn), lambda j, k: (0, j)),
            scratch_shapes=[pltpu.VMEM((n, tn), jnp.float32)],
        ),
        compiler_params=pltpu.CompilerParams(
            dimension_semantics=("parallel", "arbitrary"),
            vmem_limit_bytes=budget),
        cost_estimate=cost,
    )(x, w, g, b)


# ----------------------------------------------------------------------------
# Final Linear (no bias): accumulate directly into the f32 output block.
# grid = (out_tiles, k_tiles); full batch per block, activations resident.
# ----------------------------------------------------------------------------
def _linear_kernel(a_ref, w_ref, o_ref, *, tk, a_resident):
    k = pl.program_id(1)

    @pl.when(k == 0)
    def _():
        o_ref[...] = jnp.zeros_like(o_ref)

    if a_resident:
        start = pl.multiple_of(k * tk, tk)
        a_chunk = a_ref[:, pl.ds(start, tk)]
    else:
        a_chunk = a_ref[...]
    o_ref[...] += jnp.dot(a_chunk, w_ref[...],
                          preferred_element_type=jnp.float32)


def _linear(a, w, *, budget):
    m, kdim = a.shape
    _, ndim = w.shape
    a_resident = 2 * m * kdim * a.dtype.itemsize <= budget // 3
    tn, tk = _select_tiles(m, kdim, ndim, budget, a_resident)
    grid = (ndim // tn, kdim // tk)

    a_reads = 1 if a_resident else (ndim // tn)
    cost = pl.CostEstimate(
        flops=int(2 * m * kdim * ndim),
        transcendentals=0,
        bytes_accessed=int(a_reads * a.size * a.dtype.itemsize
                           + w.size * w.dtype.itemsize + m * ndim * 4),
    )

    if a_resident:
        a_spec = pl.BlockSpec((m, kdim), lambda j, k: (0, 0))  # streamed once
    else:
        a_spec = pl.BlockSpec((m, tk), lambda j, k: (0, k))

    kernel = functools.partial(_linear_kernel, tk=tk, a_resident=a_resident)

    return pl.pallas_call(
        kernel,
        out_shape=jax.ShapeDtypeStruct((m, ndim), jnp.float32),
        grid_spec=pltpu.PrefetchScalarGridSpec(
            num_scalar_prefetch=0,
            grid=grid,
            in_specs=[a_spec,
                      pl.BlockSpec((tk, tn), lambda j, k: (k, j))],
            out_specs=pl.BlockSpec((m, tn), lambda j, k: (0, j)),
        ),
        compiler_params=pltpu.CompilerParams(
            dimension_semantics=("parallel", "arbitrary"),
            vmem_limit_bytes=budget),
        cost_estimate=cost,
    )(a, w)


# ----------------------------------------------------------------------------
# Full ProjectionHead forward.
# ----------------------------------------------------------------------------
def projection_head(x, params, *, force_tiled=False):
    """x: (N, input_dim).  params: weights as (in, out) bf16, BN gamma/beta f32."""
    budget = _vmem_budget()
    h = x.astype(jnp.bfloat16)
    n, d_in = h.shape
    d_hid = params["w1"].shape[1]
    d_out = params["w3"].shape[1]

    if not force_tiled and _fits_fused(n, d_in, d_hid, d_out, budget):
        # Single kernel: avoids 3 launches and 2 HBM round-trips of h.
        return _fused_projection(h, params, budget)

    h = _linear_bn_relu(h, params["w1"], params["g1"], params["b1"], budget=budget)
    h = _linear_bn_relu(h, params["w2"], params["g2"], params["b2"], budget=budget)
    return _linear(h, params["w3"], budget=budget)


def init_params(key, input_dim, hidden_dim, output_dim):
    """Deterministic synthetic init.  Linear weights stored (in, out) in bf16
    (pre-transposed relative to PyTorch's (out, in))."""
    k1, k2, k3 = jax.random.split(key, 3)
    scale = 0.05
    bf = jnp.bfloat16
    return {
        "w1": (scale * jax.random.normal(k1, (input_dim, hidden_dim), jnp.float32)).astype(bf),
        "g1": jnp.ones((1, hidden_dim), jnp.float32),    # BN gamma (default 1)
        "b1": jnp.zeros((1, hidden_dim), jnp.float32),   # BN beta  (default 0)
        "w2": (scale * jax.random.normal(k2, (hidden_dim, hidden_dim), jnp.float32)).astype(bf),
        "g2": jnp.ones((1, hidden_dim), jnp.float32),
        "b2": jnp.zeros((1, hidden_dim), jnp.float32),
        "w3": (scale * jax.random.normal(k3, (hidden_dim, output_dim), jnp.float32)).astype(bf),
    }


def reference_forward(x, p):
    """Pure-JAX reference with the same bf16-matmul / f32-accumulate recipe."""
    def bn_relu(h, g, b):
        m = jnp.mean(h, axis=0, keepdims=True)
        v = jnp.mean((h - m) ** 2, axis=0, keepdims=True)
        s = g * jax.lax.rsqrt(v + EPS)
        t = b - m * s
        return jnp.maximum(h * s + t, 0.0)

    bf = jnp.bfloat16
    h = jnp.dot(x.astype(bf), p["w1"], preferred_element_type=jnp.float32)
    h = bn_relu(h, p["g1"], p["b1"]).astype(bf)
    h = jnp.dot(h, p["w2"], preferred_element_type=jnp.float32)
    h = bn_relu(h, p["g2"], p["b2"]).astype(bf)
    return jnp.dot(h, p["w3"], preferred_element_type=jnp.float32)


if __name__ == "__main__":
    key = jax.random.PRNGKey(0)
    kx, kp = jax.random.split(key)

    # Small but lane-dense shapes (128-multiples) consistent with the module.
    batch, input_dim, hidden_dim, output_dim = 64, 256, 256, 128
    x = jax.random.normal(kx, (batch, input_dim), jnp.float32)
    params = init_params(kp, input_dim, hidden_dim, output_dim)
    ref = reference_forward(x, params)

    # Path 1: single fused kernel (small-problem fast path).
    out = jax.block_until_ready(projection_head(x, params))
    assert out.shape == (batch, output_dim)
    assert jnp.allclose(out, ref, atol=2e-3, rtol=2e-3), (
        float(jnp.max(jnp.abs(out - ref))))

    # Path 2: force the tiled three-kernel path (exercised for large shapes).
    out_tiled = jax.block_until_ready(projection_head(x, params, force_tiled=True))
    assert jnp.allclose(out_tiled, ref, atol=2e-3, rtol=2e-3), (
        float(jnp.max(jnp.abs(out_tiled - ref))))

    # TODO(synk): BatchNorm1d running_mean/running_var buffer updates (training
    # side effect) are not emitted; only the forward output is produced.

    print("KERNEL_OK")
</pallas_src>

<mosaic_0001>
module attributes {stable_mosaic.version = 11 : i64} {
  func.func @_fused_kernel(%arg0: memref<64x256xbf16, #tpu.memory_space<vmem>>, %arg1: memref<256x256xbf16, #tpu.memory_space<vmem>>, %arg2: memref<1x256xf32, #tpu.memory_space<vmem>>, %arg3: memref<1x256xf32, #tpu.memory_space<vmem>>, %arg4: memref<256x256xbf16, #tpu.memory_space<vmem>>, %arg5: memref<1x256xf32, #tpu.memory_space<vmem>>, %arg6: memref<1x256xf32, #tpu.memory_space<vmem>>, %arg7: memref<256x128xbf16, #tpu.memory_space<vmem>>, %arg8: memref<64x128xf32, #tpu.memory_space<vmem>>) attributes {dimension_semantics = [], scalar_prefetch = 0 : i64, scratch_operands = 0 : i64, tpu.core_type = #tpu.core_type<tc>} {
    %c0 = arith.constant 0 : index
    %c0_0 = arith.constant 0 : index
    %0 = vector.load %arg0[%c0, %c0_0] : memref<64x256xbf16, #tpu.memory_space<vmem>>, vector<64x256xbf16>
    %c0_1 = arith.constant 0 : index
    %c0_2 = arith.constant 0 : index
    %1 = vector.load %arg1[%c0_1, %c0_2] : memref<256x256xbf16, #tpu.memory_space<vmem>>, vector<256x256xbf16>
    %cst = arith.constant dense<0.000000e+00> : vector<64x256xf32>
    %2 = tpu.matmul %0, %1, %cst {dimension_numbers = #tpu.dot_dimension_numbers<[1], [0], [0], [1], [0, 0, 1, 1], [], []>} : vector<64x256xbf16>, vector<256x256xbf16>, vector<64x256xf32> -> vector<64x256xf32>
    %c0_3 = arith.constant 0 : index
    %c0_4 = arith.constant 0 : index
    %3 = vector.load %arg2[%c0_3, %c0_4] : memref<1x256xf32, #tpu.memory_space<vmem>>, vector<1x256xf32>
    %c0_5 = arith.constant 0 : index
    %c0_6 = arith.constant 0 : index
    %4 = vector.load %arg3[%c0_5, %c0_6] : memref<1x256xf32, #tpu.memory_space<vmem>>, vector<1x256xf32>
    %cst_7 = arith.constant dense<0.000000e+00> : vector<256xf32>
    %5 = vector.multi_reduction <add>, %2, %cst_7 [0] : vector<64x256xf32> to vector<256xf32>
    %6 = vector.shape_cast %5 : vector<256xf32> to vector<1x256xf32>
    %7 = arith.mulf %2, %2 : vector<64x256xf32>
    %cst_8 = arith.constant dense<0.000000e+00> : vector<256xf32>
    %8 = vector.multi_reduction <add>, %7, %cst_8 [0] : vector<64x256xf32> to vector<256xf32>
    %9 = vector.shape_cast %8 : vector<256xf32> to vector<1x256xf32>
    %cst_9 = arith.constant 1.562500e-02 : f32
    %10 = vector.broadcast %cst_9 : f32 to vector<1x256xf32>
    %11 = arith.mulf %6, %10 : vector<1x256xf32>
    %cst_10 = arith.constant 1.562500e-02 : f32
    %12 = vector.broadcast %cst_10 : f32 to vector<1x256xf32>
    %13 = arith.mulf %9, %12 : vector<1x256xf32>
    %14 = arith.mulf %11, %11 : vector<1x256xf32>
    %15 = arith.subf %13, %14 : vector<1x256xf32>
    %cst_11 = arith.constant 9.99999974E-6 : f32
    %16 = vector.broadcast %cst_11 : f32 to vector<1x256xf32>
    %17 = arith.addf %15, %16 : vector<1x256xf32>
    %18 = math.rsqrt %17 : vector<1x256xf32>
    %19 = arith.mulf %3, %18 : vector<1x256xf32>
    %20 = arith.mulf %11, %19 : vector<1x256xf32>
    %21 = arith.subf %4, %20 : vector<1x256xf32>
    %22 = vector.broadcast %19 : vector<1x256xf32> to vector<64x256xf32>
    %23 = arith.mulf %2, %22 : vector<64x256xf32>
    %24 = vector.broadcast %21 : vector<1x256xf32> to vector<64x256xf32>
    %25 = arith.addf %23, %24 : vector<64x256xf32>
    %cst_12 = arith.constant 0.000000e+00 : f32
    %26 = vector.broadcast %cst_12 : f32 to vector<64x256xf32>
    %27 = arith.maximumf %25, %26 : vector<64x256xf32>
    %28 = arith.truncf %27 : vector<64x256xf32> to vector<64x256xbf16>
    %c0_13 = arith.constant 0 : index
    %c0_14 = arith.constant 0 : index
    %29 = vector.load %arg4[%c0_13, %c0_14] : memref<256x256xbf16, #tpu.memory_space<vmem>>, vector<256x256xbf16>
    %cst_15 = arith.constant dense<0.000000e+00> : vector<64x256xf32>
    %30 = tpu.matmul %28, %29, %cst_15 {dimension_numbers = #tpu.dot_dimension_numbers<[1], [0], [0], [1], [0, 0, 1, 1], [], []>} : vector<64x256xbf16>, vector<256x256xbf16>, vector<64x256xf32> -> vector<64x256xf32>
    %c0_16 = arith.constant 0 : index
    %c0_17 = arith.constant 0 : index
    %31 = vector.load %arg5[%c0_16, %c0_17] : memref<1x256xf32, #tpu.memory_space<vmem>>, vector<1x256xf32>
    %c0_18 = arith.constant 0 : index
    %c0_19 = arith.constant 0 : index
    %32 = vector.load %arg6[%c0_18, %c0_19] : memref<1x256xf32, #tpu.memory_space<vmem>>, vector<1x256xf32>
    %cst_20 = arith.constant dense<0.000000e+00> : vector<256xf32>
    %33 = vector.multi_reduction <add>, %30, %cst_20 [0] : vector<64x256xf32> to vector<256xf32>
    %34 = vector.shape_cast %33 : vector<256xf32> to vector<1x256xf32>
    %35 = arith.mulf %30, %30 : vector<64x256xf32>
    %cst_21 = arith.constant dense<0.000000e+00> : vector<256xf32>
    %36 = vector.multi_reduction <add>, %35, %cst_21 [0] : vector<64x256xf32> to vector<256xf32>
    %37 = vector.shape_cast %36 : vector<256xf32> to vector<1x256xf32>
    %cst_22 = arith.constant 1.562500e-02 : f32
    %38 = vector.broadcast %cst_22 : f32 to vector<1x256xf32>
    %39 = arith.mulf %34, %38 : vector<1x256xf32>
    %cst_23 = arith.constant 1.562500e-02 : f32
    %40 = vector.broadcast %cst_23 : f32 to vector<1x256xf32>
    %41 = arith.mulf %37, %40 : vector<1x256xf32>
    %42 = arith.mulf %39, %39 : vector<1x256xf32>
    %43 = arith.subf %41, %42 : vector<1x256xf32>
    %cst_24 = arith.constant 9.99999974E-6 : f32
    %44 = vector.broadcast %cst_24 : f32 to vector<1x256xf32>
    %45 = arith.addf %43, %44 : vector<1x256xf32>
    %46 = math.rsqrt %45 : vector<1x256xf32>
    %47 = arith.mulf %31, %46 : vector<1x256xf32>
    %48 = arith.mulf %39, %47 : vector<1x256xf32>
    %49 = arith.subf %32, %48 : vector<1x256xf32>
    %50 = vector.broadcast %47 : vector<1x256xf32> to vector<64x256xf32>
    %51 = arith.mulf %30, %50 : vector<64x256xf32>
    %52 = vector.broadcast %49 : vector<1x256xf32> to vector<64x256xf32>
    %53 = arith.addf %51, %52 : vector<64x256xf32>
    %cst_25 = arith.constant 0.000000e+00 : f32
    %54 = vector.broadcast %cst_25 : f32 to vector<64x256xf32>
    %55 = arith.maximumf %53, %54 : vector<64x256xf32>
    %56 = arith.truncf %55 : vector<64x256xf32> to vector<64x256xbf16>
    %c0_26 = arith.constant 0 : index
    %c0_27 = arith.constant 0 : index
    %57 = vector.load %arg7[%c0_26, %c0_27] : memref<256x128xbf16, #tpu.memory_space<vmem>>, vector<256x128xbf16>
    %cst_28 = arith.constant dense<0.000000e+00> : vector<64x128xf32>
    %58 = tpu.matmul %56, %57, %cst_28 {dimension_numbers = #tpu.dot_dimension_numbers<[1], [0], [0], [1], [0, 0, 1, 1], [], []>} : vector<64x256xbf16>, vector<256x128xbf16>, vector<64x128xf32> -> vector<64x128xf32>
    %c0_29 = arith.constant 0 : index
    %c0_30 = arith.constant 0 : index
    %59 = vector.load %arg8[%c0_29, %c0_30] : memref<64x128xf32, #tpu.memory_space<vmem>>, vector<64x128xf32>
    tpu.vector_store %arg8[%c0_29, %c0_30], %58 {strides = array<i32>} : memref<64x128xf32, #tpu.memory_space<vmem>>, vector<64x128xf32>,
    return
  }
}

</mosaic_0001>

<llo_original>
// kernel: tpu_custom_call.1
$region0: #{tpu_custom_call.1}
  #allocation0 [shape = 'u32[]', space=smem, size = 0x4, offset = 0x4, fixed_abs, tag = 'smem constant byte address 0x4 - core index']
  #allocation1 [shape = 'u32[72,128]{1,0:T(1,128)}', space=vmem, size = 0x9000, scoped, tag = 'internal scratch']
  %s0 = inlined_call_operand.hbm [shape: bf16[64,256], index: 0, kind: input, shape index: {}]
  %s1 = inlined_call_operand.hbm [shape: bf16[256,256], index: 1, kind: input, shape index: {}]
  %s2 = inlined_call_operand.hbm [shape: f32[1,256], index: 2, kind: input, shape index: {}]
  %s3 = inlined_call_operand.vmem [shape: f32[1,256], index: 3, kind: input, shape index: {}]
  %s4 = inlined_call_operand.hbm [shape: bf16[256,256], index: 4, kind: input, shape index: {}]
  %s5 = inlined_call_operand.vmem [shape: f32[1,256], index: 5, kind: input, shape index: {}]
  %s6 = inlined_call_operand.hbm [shape: f32[1,256], index: 6, kind: input, shape index: {}]
  %s7 = inlined_call_operand.hbm [shape: bf16[256,128], index: 7, kind: input, shape index: {}]
  %s8 = inlined_call_operand.hbm [shape: f32[64,128], index: 8, kind: output, shape index: {}]
  %s9 = sld [smem:[#allocation0]]
  $region66: #{tpu_custom_call.1} parent=0
    _
  %s11 = ssub.s32 1, %s9
  %s12 = scalar_select 0, %s11, %s9
  $region1: #{tpu_custom_call.1} parent=0
    #allocation2 [shape = 'u8[32768]{0}', space=vmem, size = 0x8000, scoped, tag = 'input window, operand 0, single buffered']
    #allocation3 [shape = 's32[1]{0}', space=sflag, size = 0x4, scoped, tag = 'scoped memory for tpu_custom_call.1']
    #allocation4 [shape = 's32[1]{0}', space=sflag, size = 0x4, scoped, tag = 'scoped memory for tpu_custom_call.1']
    #allocation5 [shape = 'u8[131072]{0}', space=vmem, size = 0x20000, scoped, tag = 'input window, operand 1, single buffered']
    #allocation6 [shape = 's32[1]{0}', space=sflag, size = 0x4, scoped, tag = 'scoped memory for tpu_custom_call.1']
    #allocation7 [shape = 'u8[1024]{0}', space=vmem, size = 0x400, scoped, tag = 'input window, operand 2, single buffered']
    #allocation8 [shape = 'u8[131072]{0}', space=vmem, size = 0x20000, scoped, tag = 'input window, operand 4, single buffered']
    #allocation9 [shape = 's32[1]{0}', space=sflag, size = 0x4, scoped, tag = 'scoped memory for tpu_custom_call.1']
    #allocation10 [shape = 'u8[1024]{0}', space=vmem, size = 0x400, scoped, tag = 'input window, operand 6, single buffered']
    #allocation11 [shape = 'u8[65536]{0}', space=vmem, size = 0x10000, scoped, tag = 'input window, operand 7, single buffered']
    #allocation12 [shape = 's32[1]{0}', space=sflag, size = 0x4, scoped, tag = 'scoped memory for tpu_custom_call.1']
    #allocation13 [shape = 'u8[32768]{0}', space=vmem, size = 0x8000, scoped, tag = 'output window, operand 0, single buffered']
    %13 = vsyncpa [#allocation3], 0
    %14 = vsyncpa [#allocation6], 0
    %15 = vsyncpa [#allocation9], 0
    %16 = vsyncpa [#allocation12], 0
    %17 = vsyncpa [#allocation4], 0
    // Predicated region
    $region2: #{tpu_custom_call.1} parent=1 // pred_check
      _
    $region3: #{tpu_custom_call.1} parent=1 // pred_check_branch
      %19 = sbr.rel (0) target = $region5
    $region4: #{tpu_custom_call.1} parent=1 // pred_region
      %21 = vsyncadd [#allocation3], 0
      %s22 = sshll.u32 %s0, 4
      %s23 = int_to_ptr.hbm [resolvable:$true] %s22
      %s24 = sshll.u32 [#allocation2], 4
      %s25 = int_to_ptr.vmem [resolvable:$true] %s24
      %30 = dma.hbm_to_vmem [thread:$0]  %s23, 1024, %s25, [#allocation3], 128, 128, 8
    $region5: #{tpu_custom_call.1} parent=1 // pred_fallthru
      _
    // Predicated region
    $region6: #{tpu_custom_call.1} parent=1 // pred_check
      _
    $region7: #{tpu_custom_call.1} parent=1 // pred_check_branch
      %32 = sbr.rel (0) target = $region9
    $region8: #{tpu_custom_call.1} parent=1 // pred_region
      %34 = vsyncadd [#allocation6], 0
      %s35 = sshll.u32 %s1, 4
      %s36 = int_to_ptr.hbm [resolvable:$true] %s35
      %s37 = sshll.u32 [#allocation5], 4
      %s38 = int_to_ptr.vmem [resolvable:$true] %s37
      %43 = dma.hbm_to_vmem [thread:$0]  %s36, 4096, %s38, [#allocation6], 128, 128, 8
    $region9: #{tpu_custom_call.1} parent=1 // pred_fallthru
      _
    // Predicated region
    $region10: #{tpu_custom_call.1} parent=1 // pred_check
      _
    $region11: #{tpu_custom_call.1} parent=1 // pred_check_branch
      %45 = sbr.rel (0) target = $region13
    $region12: #{tpu_custom_call.1} parent=1 // pred_region
      %47 = vsyncadd [#allocation6], 0
      %s49 = sshll.u32 %s2, 4
      %s50 = int_to_ptr.hbm [resolvable:$true] %s49
      %s51 = sshll.u32 [#allocation7], 4
      %s52 = int_to_ptr.vmem [resolvable:$true] %s51
      %54 = dma.hbm_to_vmem [thread:$0]  %s50, 32, %s52, [#allocation6]
    $region13: #{tpu_custom_call.1} parent=1 // pred_fallthru
      _
    // Predicated region
    $region14: #{tpu_custom_call.1} parent=1 // pred_check
      _
    $region15: #{tpu_custom_call.1} parent=1 // pred_check_branch
      %56 = sbr.rel (0) target = $region17
    $region16: #{tpu_custom_call.1} parent=1 // pred_region
      _
    $region17: #{tpu_custom_call.1} parent=1 // pred_fallthru
      _
    // Predicated region
    $region18: #{tpu_custom_call.1} parent=1 // pred_check
      _
    $region19: #{tpu_custom_call.1} parent=1 // pred_check_branch
      %58 = sbr.rel (0) target = $region21
    $region20: #{tpu_custom_call.1} parent=1 // pred_region
      %60 = vsyncadd [#allocation9], 0
      %s61 = sshll.u32 %s4, 4
      %s62 = int_to_ptr.hbm [resolvable:$true] %s61
      %s63 = sshll.u32 [#allocation8], 4
      %s64 = int_to_ptr.vmem [resolvable:$true] %s63
      %69 = dma.hbm_to_vmem [thread:$0]  %s62, 4096, %s64, [#allocation9], 128, 128, 8
    $region21: #{tpu_custom_call.1} parent=1 // pred_fallthru
      _
    // Predicated region
    $region22: #{tpu_custom_call.1} parent=1 // pred_check
      _
    $region23: #{tpu_custom_call.1} parent=1 // pred_check_branch
      %71 = sbr.rel (0) target = $region25
    $region24: #{tpu_custom_call.1} parent=1 // pred_region
      _
    $region25: #{tpu_custom_call.1} parent=1 // pred_fallthru
      _
    // Predicated region
    $region26: #{tpu_custom_call.1} parent=1 // pred_check
      _
    $region27: #{tpu_custom_call.1} parent=1 // pred_check_branch
      %73 = sbr.rel (0) target = $region29
    $region28: #{tpu_custom_call.1} parent=1 // pred_region
      %75 = vsyncadd [#allocation9], 0
      %s77 = sshll.u32 %s6, 4
      %s78 = int_to_ptr.hbm [resolvable:$true] %s77
      %s79 = sshll.u32 [#allocation10], 4
      %s80 = int_to_ptr.vmem [resolvable:$true] %s79
      %82 = dma.hbm_to_vmem [thread:$0]  %s78, 32, %s80, [#allocation9]
    $region29: #{tpu_custom_call.1} parent=1 // pred_fallthru
      _
    // Predicated region
    $region30: #{tpu_custom_call.1} parent=1 // pred_check
      _
    $region31: #{tpu_custom_call.1} parent=1 // pred_check_branch
      %84 = sbr.rel (0) target = $region33
    $region32: #{tpu_custom_call.1} parent=1 // pred_region
      %86 = vsyncadd [#allocation12], 0
      %s87 = sshll.u32 %s7, 4
      %s88 = int_to_ptr.hbm [resolvable:$true] %s87
      %s89 = sshll.u32 [#allocation11], 4
      %s90 = int_to_ptr.vmem [resolvable:$true] %s89
      %95 = dma.hbm_to_vmem [thread:$0]  %s88, 2048, %s90, [#allocation12], 64, 64, 4
    $region33: #{tpu_custom_call.1} parent=1 // pred_fallthru
      _
    // Predicated region
    $region34: #{tpu_custom_call.1} parent=1 // pred_check
      _
    $region35: #{tpu_custom_call.1} parent=1 // pred_check_branch
      %97 = sbr.rel (0) target = $region37
    $region36: #{tpu_custom_call.1} parent=1 // pred_region
      %99 = dma.done [#allocation3], 1024
    $region37: #{tpu_custom_call.1} parent=1 // pred_fallthru
      _
    // Predicated region
    $region38: #{tpu_custom_call.1} parent=1 // pred_check
      _
    $region39: #{tpu_custom_call.1} parent=1 // pred_check_branch
      %101 = sbr.rel (0) target = $region41
    $region40: #{tpu_custom_call.1} parent=1 // pred_region
      %103 = dma.done [#allocation6], 4096
    $region41: #{tpu_custom_call.1} parent=1 // pred_fallthru
      _
    // Predicated region
    $region42: #{tpu_custom_call.1} parent=1 // pred_check
      _
    $region43: #{tpu_custom_call.1} parent=1 // pred_check_branch
      %105 = sbr.rel (0) target = $region45
    $region44: #{tpu_custom_call.1} parent=1 // pred_region
      %107 = dma.done [#allocation6], 32
    $region45: #{tpu_custom_call.1} parent=1 // pred_fallthru
      _
    // Predicated region
    $region46: #{tpu_custom_call.1} parent=1 // pred_check
      _
    $region47: #{tpu_custom_call.1} parent=1 // pred_check_branch
      %109 = sbr.rel (0) target = $region49
    $region48: #{tpu_custom_call.1} parent=1 // pred_region
      %111 = dma.done [#allocation9], 4096
    $region49: #{tpu_custom_call.1} parent=1 // pred_fallthru
      _
    // Predicated region
    $region50: #{tpu_custom_call.1} parent=1 // pred_check
      _
    $region51: #{tpu_custom_call.1} parent=1 // pred_check_branch
      %113 = sbr.rel (0) target = $region53
    $region52: #{tpu_custom_call.1} parent=1 // pred_region
      %115 = dma.done [#allocation9], 32
    $region53: #{tpu_custom_call.1} parent=1 // pred_fallthru
      _
    // Predicated region
    $region54: #{tpu_custom_call.1} parent=1 // pred_check
      _
    $region55: #{tpu_custom_call.1} parent=1 // pred_check_branch
      %117 = sbr.rel (0) target = $region57
    $region56: #{tpu_custom_call.1} parent=1 // pred_region
      %119 = dma.done [#allocation12], 2048
    $region57: #{tpu_custom_call.1} parent=1 // pred_fallthru
      _
    %v120 = vld [vmem:[#allocation2] sm:$0xff]
    %v121 = vld [vmem:[#allocation2 + $0x8] sm:$0xff]
    %v122 = vld [vmem:[#allocation2 + $0x10] sm:$0xff]
    %v123 = vld [vmem:[#allocation2 + $0x18] sm:$0xff]
    %v124 = vld [vmem:[#allocation2 + $0x20] sm:$0xff]
    %v125 = vld [vmem:[#allocation2 + $0x28] sm:$0xff]
    %v126 = vld [vmem:[#allocation2 + $0x30] sm:$0xff]
    %v127 = vld [vmem:[#allocation2 + $0x38] sm:$0xff]
    %v128 = vld [vmem:[#allocation5] sm:$0xff]
    %v129 = vld [vmem:[#allocation5 + $0x8] sm:$0xff]
    %v130 = vld [vmem:[#allocation5 + $0x10] sm:$0xff]
    %v131 = vld [vmem:[#allocation5 + $0x18] sm:$0xff]
    %v132 = vld [vmem:[#allocation5 + $0x20] sm:$0xff]
    %v133 = vld [vmem:[#allocation5 + $0x28] sm:$0xff]
    %v134 = vld [vmem:[#allocation5 + $0x30] sm:$0xff]
    %v135 = vld [vmem:[#allocation5 + $0x38] sm:$0xff]
    %v136 = vld [vmem:[#allocation5 + $0x40] sm:$0xff]
    %v137 = vld [vmem:[#allocation5 + $0x48] sm:$0xff]
    %v138 = vld [vmem:[#allocation5 + $0x50] sm:$0xff]
    %v139 = vld [vmem:[#allocation5 + $0x58] sm:$0xff]
    %v140 = vld [vmem:[#allocation5 + $0x60] sm:$0xff]
    %v141 = vld [vmem:[#allocation5 + $0x68] sm:$0xff]
    %v142 = vld [vmem:[#allocation5 + $0x70] sm:$0xff]
    %v143 = vld [vmem:[#allocation5 + $0x78] sm:$0xff]
    %v144 = vld [vmem:[#allocation5 + $0x80] sm:$0xff]
    %v145 = vld [vmem:[#allocation5 + $0x88] sm:$0xff]
    %v146 = vld [vmem:[#allocation5 + $0x90] sm:$0xff]
    %v147 = vld [vmem:[#allocation5 + $0x98] sm:$0xff]
    %v148 = vld [vmem:[#allocation5 + $0xa0] sm:$0xff]
    %v149 = vld [vmem:[#allocation5 + $0xa8] sm:$0xff]
    %v150 = vld [vmem:[#allocation5 + $0xb0] sm:$0xff]
    %v151 = vld [vmem:[#allocation5 + $0xb8] sm:$0xff]
    %v152 = vld [vmem:[#allocation5 + $0xc0] sm:$0xff]
    %v153 = vld [vmem:[#allocation5 + $0xc8] sm:$0xff]
    %v154 = vld [vmem:[#allocation5 + $0xd0] sm:$0xff]
    %v155 = vld [vmem:[#allocation5 + $0xd8] sm:$0xff]
    %v156 = vld [vmem:[#allocation5 + $0xe0] sm:$0xff]
    %v157 = vld [vmem:[#allocation5 + $0xe8] sm:$0xff]
    %v158 = vld [vmem:[#allocation5 + $0xf0] sm:$0xff]
    %v159 = vld [vmem:[#allocation5 + $0xf8] sm:$0xff]
    %v168 = vunpack.c.l.b16 %v120
    %v169 = vunpack.c.h.b16 %v120
    %v170 = vunpack.c.l.b16 %v121
    %v171 = vunpack.c.h.b16 %v121
    %v172 = vunpack.c.l.b16 %v122
    %v173 = vunpack.c.h.b16 %v122
    %v174 = vunpack.c.l.b16 %v123
    %v175 = vunpack.c.h.b16 %v123
    %v176 = vunpack.c.l.b16 %v124
    %v177 = vunpack.c.h.b16 %v124
    %v178 = vunpack.c.l.b16 %v125
    %v179 = vunpack.c.h.b16 %v125
    %v180 = vunpack.c.l.b16 %v126
    %v181 = vunpack.c.h.b16 %v126
    %v182 = vunpack.c.l.b16 %v127
    %v183 = vunpack.c.h.b16 %v127
    %v184 = vpack.c.b16 %v170, %v168
    %v185 = vpack.c.b16 %v171, %v169
    %v186 = vpack.c.b16 %v174, %v172
    %v187 = vpack.c.b16 %v175, %v173
    %v188 = vpack.c.b16 %v178, %v176
    %v189 = vpack.c.b16 %v179, %v177
    %v190 = vpack.c.b16 %v182, %v180
    %v191 = vpack.c.b16 %v183, %v181
    %v232 = vunpack.c.l.b16 %v128
    %v233 = vunpack.c.h.b16 %v128
    %v234 = vunpack.c.l.b16 %v129
    %v235 = vunpack.c.h.b16 %v129
    %v236 = vunpack.c.l.b16 %v130
    %v237 = vunpack.c.h.b16 %v130
    %v238 = vunpack.c.l.b16 %v131
    %v239 = vunpack.c.h.b16 %v131
    %v240 = vunpack.c.l.b16 %v132
    %v241 = vunpack.c.h.b16 %v132
    %v242 = vunpack.c.l.b16 %v133
    %v243 = vunpack.c.h.b16 %v133
    %v244 = vunpack.c.l.b16 %v134
    %v245 = vunpack.c.h.b16 %v134
    %v246 = vunpack.c.l.b16 %v135
    %v247 = vunpack.c.h.b16 %v135
    %v248 = vunpack.c.l.b16 %v136
    %v249 = vunpack.c.h.b16 %v136
    %v250 = vunpack.c.l.b16 %v137
    %v251 = vunpack.c.h.b16 %v137
    %v252 = vunpack.c.l.b16 %v138
    %v253 = vunpack.c.h.b16 %v138
    %v254 = vunpack.c.l.b16 %v139
    %v255 = vunpack.c.h.b16 %v139
    %v256 = vunpack.c.l.b16 %v140
    %v257 = vunpack.c.h.b16 %v140
    %v258 = vunpack.c.l.b16 %v141
    %v259 = vunpack.c.h.b16 %v141
    %v260 = vunpack.c.l.b16 %v142
    %v261 = vunpack.c.h.b16 %v142
    %v262 = vunpack.c.l.b16 %v143
    %v263 = vunpack.c.h.b16 %v143
    %v264 = vunpack.c.l.b16 %v144
    %v265 = vunpack.c.h.b16 %v144
    %v266 = vunpack.c.l.b16 %v145
    %v267 = vunpack.c.h.b16 %v145
    %v268 = vunpack.c.l.b16 %v146
    %v269 = vunpack.c.h.b16 %v146
    %v270 = vunpack.c.l.b16 %v147
    %v271 = vunpack.c.h.b16 %v147
    %v272 = vunpack.c.l.b16 %v148
    %v273 = vunpack.c.h.b16 %v148
    %v274 = vunpack.c.l.b16 %v149
    %v275 = vunpack.c.h.b16 %v149
    %v276 = vunpack.c.l.b16 %v150
    %v277 = vunpack.c.h.b16 %v150
    %v278 = vunpack.c.l.b16 %v151
    %v279 = vunpack.c.h.b16 %v151
    %v280 = vunpack.c.l.b16 %v152
    %v281 = vunpack.c.h.b16 %v152
    %v282 = vunpack.c.l.b16 %v153
    %v283 = vunpack.c.h.b16 %v153
    %v284 = vunpack.c.l.b16 %v154
    %v285 = vunpack.c.h.b16 %v154
    %v286 = vunpack.c.l.b16 %v155
    %v287 = vunpack.c.h.b16 %v155
    %v288 = vunpack.c.l.b16 %v156
    %v289 = vunpack.c.h.b16 %v156
    %v290 = vunpack.c.l.b16 %v157
    %v291 = vunpack.c.h.b16 %v157
    %v292 = vunpack.c.l.b16 %v158
    %v293 = vunpack.c.h.b16 %v158
    %v294 = vunpack.c.l.b16 %v159
    %v295 = vunpack.c.h.b16 %v159
    %v296 = vpack.c.b16 %v234, %v232
    %v297 = vpack.c.b16 %v235, %v233
    %v298 = vpack.c.b16 %v238, %v236
    %v299 = vpack.c.b16 %v239, %v237
    %v300 = vpack.c.b16 %v242, %v240
    %v301 = vpack.c.b16 %v243, %v241
    %v302 = vpack.c.b16 %v246, %v244
    %v303 = vpack.c.b16 %v247, %v245
    %v304 = vpack.c.b16 %v250, %v248
    %v305 = vpack.c.b16 %v251, %v249
    %v306 = vpack.c.b16 %v254, %v252
    %v307 = vpack.c.b16 %v255, %v253
    %v308 = vpack.c.b16 %v258, %v256
    %v309 = vpack.c.b16 %v259, %v257
    %v310 = vpack.c.b16 %v262, %v260
    %v311 = vpack.c.b16 %v263, %v261
    %v312 = vpack.c.b16 %v266, %v264
    %v313 = vpack.c.b16 %v267, %v265
    %v314 = vpack.c.b16 %v270, %v268
    %v315 = vpack.c.b16 %v271, %v269
    %v316 = vpack.c.b16 %v274, %v272
    %v317 = vpack.c.b16 %v275, %v273
    %v318 = vpack.c.b16 %v278, %v276
    %v319 = vpack.c.b16 %v279, %v277
    %v320 = vpack.c.b16 %v282, %v280
    %v321 = vpack.c.b16 %v283, %v281
    %v322 = vpack.c.b16 %v286, %v284
    %v323 = vpack.c.b16 %v287, %v285
    %v324 = vpack.c.b16 %v290, %v288
    %v325 = vpack.c.b16 %v291, %v289
    %v326 = vpack.c.b16 %v294, %v292
    %v327 = vpack.c.b16 %v295, %v293
    %360 = vmatpush.bf16.msra.mxu0 %v310
    %361 = vmatpush.bf16.msra.mxu0 %v308
    %362 = vmatpush.bf16.msra.mxu0 %v306
    %363 = vmatpush.bf16.msra.mxu0 %v304
    %364 = vmatpush.bf16.msra.mxu0 %v302
    %365 = vmatpush.bf16.msra.mxu0 %v300
    %366 = vmatpush.bf16.msra.mxu0 %v298
    %367 = vmatpush.bf16.msra.mxu0 %v296
    %368 = vmatmul.bf16.gmra.mxu0 %v184
    %v369 = vpop.f32.mrf.mxu0
    %v370 = vadd.f32 0.0, %v369
    %v371 = vpop.f32.mrf.mxu0
    %v372 = vadd.f32 0.0, %v371
    %373 = vmatmul.bf16.gmra.mxu0 %v186
    %v374 = vpop.f32.mrf.mxu0
    %v375 = vadd.f32 0.0, %v374
    %v376 = vpop.f32.mrf.mxu0
    %v377 = vadd.f32 0.0, %v376
    %378 = vmatmul.bf16.gmra.mxu0 %v188
    %v379 = vpop.f32.mrf.mxu0
    %v380 = vadd.f32 0.0, %v379
    %v381 = vpop.f32.mrf.mxu0
    %v382 = vadd.f32 0.0, %v381
    %383 = vmatmul.bf16.gmra.mxu0 %v190
    %v384 = vpop.f32.mrf.mxu0
    %v385 = vadd.f32 0.0, %v384
    %v386 = vpop.f32.mrf.mxu0
    %v387 = vadd.f32 0.0, %v386
    %388 = vdwg.mxu0
    %389 = vmatpush.bf16.msra.mxu0 %v326
    %390 = vmatpush.bf16.msra.mxu0 %v324
    %391 = vmatpush.bf16.msra.mxu0 %v322
    %392 = vmatpush.bf16.msra.mxu0 %v320
    %393 = vmatpush.bf16.msra.mxu0 %v318
    %394 = vmatpush.bf16.msra.mxu0 %v316
    %395 = vmatpush.bf16.msra.mxu0 %v314
    %396 = vmatpush.bf16.msra.mxu0 %v312
    %397 = vmatmul.bf16.gmra.mxu0 %v185
    %v398 = vpop.f32.mrf.mxu0
    %v399 = vadd.f32 %v370, %v398
    %v400 = vpop.f32.mrf.mxu0
    %v401 = vadd.f32 %v372, %v400
    %402 = vmatmul.bf16.gmra.mxu0 %v187
    %v403 = vpop.f32.mrf.mxu0
    %v404 = vadd.f32 %v375, %v403
    %v405 = vpop.f32.mrf.mxu0
    %v406 = vadd.f32 %v377, %v405
    %407 = vmatmul.bf16.gmra.mxu0 %v189
    %v408 = vpop.f32.mrf.mxu0
    %v409 = vadd.f32 %v380, %v408
    %v410 = vpop.f32.mrf.mxu0
    %v411 = vadd.f32 %v382, %v410
    %412 = vmatmul.bf16.gmra.mxu0 %v191
    %v413 = vpop.f32.mrf.mxu0
    %v414 = vadd.f32 %v385, %v413
    %v415 = vpop.f32.mrf.mxu0
    %v416 = vadd.f32 %v387, %v415
    %417 = vdwg.mxu0
    %418 = vmatpush.bf16.msra.mxu0 %v311
    %419 = vmatpush.bf16.msra.mxu0 %v309
    %420 = vmatpush.bf16.msra.mxu0 %v307
    %421 = vmatpush.bf16.msra.mxu0 %v305
    %422 = vmatpush.bf16.msra.mxu0 %v303
    %423 = vmatpush.bf16.msra.mxu0 %v301
    %424 = vmatpush.bf16.msra.mxu0 %v299
    %425 = vmatpush.bf16.msra.mxu0 %v297
    %426 = vmatmul.bf16.gmra.mxu0 %v184
    %v427 = vpop.f32.mrf.mxu0
    %v428 = vadd.f32 0.0, %v427
    %v429 = vpop.f32.mrf.mxu0
    %v430 = vadd.f32 0.0, %v429
    %431 = vmatmul.bf16.gmra.mxu0 %v186
    %v432 = vpop.f32.mrf.mxu0
    %v433 = vadd.f32 0.0, %v432
    %v434 = vpop.f32.mrf.mxu0
    %v435 = vadd.f32 0.0, %v434
    %436 = vmatmul.bf16.gmra.mxu0 %v188
    %v437 = vpop.f32.mrf.mxu0
    %v438 = vadd.f32 0.0, %v437
    %v439 = vpop.f32.mrf.mxu0
    %v440 = vadd.f32 0.0, %v439
    %441 = vmatmul.bf16.gmra.mxu0 %v190
    %v442 = vpop.f32.mrf.mxu0
    %v443 = vadd.f32 0.0, %v442
    %v444 = vpop.f32.mrf.mxu0
    %v445 = vadd.f32 0.0, %v444
    %446 = vdwg.mxu0
    %447 = vmatpush.bf16.msra.mxu0 %v327
    %448 = vmatpush.bf16.msra.mxu0 %v325
    %449 = vmatpush.bf16.msra.mxu0 %v323
    %450 = vmatpush.bf16.msra.mxu0 %v321
    %451 = vmatpush.bf16.msra.mxu0 %v319
    %452 = vmatpush.bf16.msra.mxu0 %v317
    %453 = vmatpush.bf16.msra.mxu0 %v315
    %454 = vmatpush.bf16.msra.mxu0 %v313
    %455 = vmatmul.bf16.gmra.mxu0 %v185
    %v456 = vpop.f32.mrf.mxu0
    %v457 = vadd.f32 %v428, %v456
    %v458 = vpop.f32.mrf.mxu0
    %v459 = vadd.f32 %v430, %v458
    %460 = vmatmul.bf16.gmra.mxu0 %v187
    %v461 = vpop.f32.mrf.mxu0
    %v462 = vadd.f32 %v433, %v461
    %v463 = vpop.f32.mrf.mxu0
    %v464 = vadd.f32 %v435, %v463
    %465 = vmatmul.bf16.gmra.mxu0 %v189
    %v466 = vpop.f32.mrf.mxu0
    %v467 = vadd.f32 %v438, %v466
    %v468 = vpop.f32.mrf.mxu0
    %v469 = vadd.f32 %v440, %v468
    %470 = vmatmul.bf16.gmra.mxu0 %v191
    %v471 = vpop.f32.mrf.mxu0
    %v472 = vadd.f32 %v443, %v471
    %v473 = vpop.f32.mrf.mxu0
    %v474 = vadd.f32 %v445, %v473
    %475 = vdwg.mxu0
    %v476 = vld [vmem:[#allocation7] sm:$0x3]
    %v477 = vld [vmem:[%s3] sm:$0x3]
    %v478 = vadd.f32 %v399, %v401
    %v479 = vadd.f32 %v478, %v404
    %v480 = vadd.f32 %v479, %v406
    %v481 = vadd.f32 %v480, %v409
    %v482 = vadd.f32 %v481, %v411
    %v483 = vadd.f32 %v482, %v414
    %v484 = vadd.f32 %v483, %v416
    %v485 = vrot.slane %v484, 4
    %v486 = vadd.f32 %v484, %v485
    %v487 = vrot.slane %v486, 2
    %v488 = vadd.f32 %v486, %v487
    %v489 = vrot.slane %v488, 1
    %v490 = vadd.f32 %v488, %v489
    %v491 = vadd.f32 %v457, %v459
    %v492 = vadd.f32 %v491, %v462
    %v493 = vadd.f32 %v492, %v464
    %v494 = vadd.f32 %v493, %v467
    %v495 = vadd.f32 %v494, %v469
    %v496 = vadd.f32 %v495, %v472
    %v497 = vadd.f32 %v496, %v474
    %v498 = vrot.slane %v497, 4
    %v499 = vadd.f32 %v497, %v498
    %v500 = vrot.slane %v499, 2
    %v501 = vadd.f32 %v499, %v500
    %v502 = vrot.slane %v501, 1
    %v503 = vadd.f32 %v501, %v502
    %v504 = vmul.f32 %v399, %v399
    %v505 = vmul.f32 %v457, %v457
    %v506 = vmul.f32 %v401, %v401
    %v507 = vmul.f32 %v459, %v459
    %v508 = vmul.f32 %v404, %v404
    %v509 = vmul.f32 %v462, %v462
    %v510 = vmul.f32 %v406, %v406
    %v511 = vmul.f32 %v464, %v464
    %v512 = vmul.f32 %v409, %v409
    %v513 = vmul.f32 %v467, %v467
    %v514 = vmul.f32 %v411, %v411
    %v515 = vmul.f32 %v469, %v469
    %v516 = vmul.f32 %v414, %v414
    %v517 = vmul.f32 %v472, %v472
    %v518 = vmul.f32 %v416, %v416
    %v519 = vmul.f32 %v474, %v474
    %v520 = vadd.f32 %v504, %v506
    %v521 = vadd.f32 %v520, %v508
    %v522 = vadd.f32 %v521, %v510
    %v523 = vadd.f32 %v522, %v512
    %v524 = vadd.f32 %v523, %v514
    %v525 = vadd.f32 %v524, %v516
    %v526 = vadd.f32 %v525, %v518
    %v527 = vrot.slane %v526, 4
    %v528 = vadd.f32 %v526, %v527
    %v529 = vrot.slane %v528, 2
    %v530 = vadd.f32 %v528, %v529
    %v531 = vrot.slane %v530, 1
    %v532 = vadd.f32 %v530, %v531
    %v533 = vadd.f32 %v505, %v507
    %v534 = vadd.f32 %v533, %v509
    %v535 = vadd.f32 %v534, %v511
    %v536 = vadd.f32 %v535, %v513
    %v537 = vadd.f32 %v536, %v515
    %v538 = vadd.f32 %v537, %v517
    %v539 = vadd.f32 %v538, %v519
    %v540 = vrot.slane %v539, 4
    %v541 = vadd.f32 %v539, %v540
    %v542 = vrot.slane %v541, 2
    %v543 = vadd.f32 %v541, %v542
    %v544 = vrot.slane %v543, 1
    %v545 = vadd.f32 %v543, %v544
    %v546 = vmul.f32 %v490, 0.015625
    %v547 = vmul.f32 %v503, 0.015625
    %v548 = vmul.f32 %v532, 0.015625
    %v549 = vmul.f32 %v545, 0.015625
    %v550 = vmul.f32 %v546, %v546
    %v551 = vmul.f32 %v547, %v547
    %v552 = vsub.f32 %v548, %v550
    %v553 = vsub.f32 %v549, %v551
    %v554 = vadd.f32 %v552, 1e-05
    %v555 = vadd.f32 %v553, 1e-05
    %v556 = vrsqrt.pop %v554
    %v557 = vmul.f32 %v556, %v554
    %v558 = vmul.f32 %v557, %v556
    %v559 = vmul.f32 0.5, %v558
    %v560 = vsub.f32 1.5, %v559
    %v561 = vmul.f32 %v556, %v560
    %vm562 = vweird.f32 %v554
    %vm563 = vweird.f32 %v556
    %vm564 = vmor %vm562, %vm563
    %v565 = vsel %vm564, %v556, %v561
    %v566 = vrsqrt.pop %v555
    %v567 = vmul.f32 %v566, %v555
    %v568 = vmul.f32 %v567, %v566
    %v569 = vmul.f32 0.5, %v568
    %v570 = vsub.f32 1.5, %v569
    %v571 = vmul.f32 %v566, %v570
    %vm572 = vweird.f32 %v555
    %vm573 = vweird.f32 %v566
    %vm574 = vmor %vm572, %vm573
    %v575 = vsel %vm574, %v566, %v571
    %v578 = vrot.slane %v575, 7
    %vm579 = vcmask 1040384
    %v580 = vsel %vm579, %v565, %v578
    %v582 = vmul.f32 %v476, %v580
    %v584 = vperm.slane %v582, 0
    %v585 = vperm.slane %v582, 1
    %v588 = vmul.f32 %v546, %v584
    %v589 = vmul.f32 %v547, %v585
    %v592 = vrot.slane %v589, 7
    %v593 = vsel %vm579, %v588, %v592
    %v595 = vsub.f32 %v477, %v593
    %v596 = vmul.f32 %v399, %v584
    %v597 = vmul.f32 %v457, %v585
    %v598 = vmul.f32 %v401, %v584
    %v599 = vmul.f32 %v459, %v585
    %v600 = vmul.f32 %v404, %v584
    %v601 = vmul.f32 %v462, %v585
    %v602 = vmul.f32 %v406, %v584
    %v603 = vmul.f32 %v464, %v585
    %v604 = vmul.f32 %v409, %v584
    %v605 = vmul.f32 %v467, %v585
    %v606 = vmul.f32 %v411, %v584
    %v607 = vmul.f32 %v469, %v585
    %v608 = vmul.f32 %v414, %v584
    %v609 = vmul.f32 %v472, %v585
    %v610 = vmul.f32 %v416, %v584
    %v611 = vmul.f32 %v474, %v585
    %v613 = vperm.slane %v595, 0
    %v614 = vperm.slane %v595, 1
    %v617 = vadd.f32 %v596, %v613
    %v618 = vadd.f32 %v597, %v614
    %v619 = vadd.f32 %v598, %v613
    %v620 = vadd.f32 %v599, %v614
    %v621 = vadd.f32 %v600, %v613
    %v622 = vadd.f32 %v601, %v614
    %v623 = vadd.f32 %v602, %v613
    %v624 = vadd.f32 %v603, %v614
    %v625 = vadd.f32 %v604, %v613
    %v626 = vadd.f32 %v605, %v614
    %v627 = vadd.f32 %v606, %v613
    %v628 = vadd.f32 %v607, %v614
    %v629 = vadd.f32 %v608, %v613
    %v630 = vadd.f32 %v609, %v614
    %v631 = vadd.f32 %v610, %v613
    %v632 = vadd.f32 %v611, %v614
    %v633 = vmax.f32 %v617, 0.0
    %v634 = vmax.f32 %v618, 0.0
    %v635 = vmax.f32 %v619, 0.0
    %v636 = vmax.f32 %v620, 0.0
    %v637 = vmax.f32 %v621, 0.0
    %v638 = vmax.f32 %v622, 0.0
    %v639 = vmax.f32 %v623, 0.0
    %v640 = vmax.f32 %v624, 0.0
    %v641 = vmax.f32 %v625, 0.0
    %v642 = vmax.f32 %v626, 0.0
    %v643 = vmax.f32 %v627, 0.0
    %v644 = vmax.f32 %v628, 0.0
    %v645 = vmax.f32 %v629, 0.0
    %v646 = vmax.f32 %v630, 0.0
    %v647 = vmax.f32 %v631, 0.0
    %v648 = vmax.f32 %v632, 0.0
    %v649 = vpack.c.bf16 %v635, %v633
    %v650 = vpack.c.bf16 %v636, %v634
    %v651 = vpack.c.bf16 %v639, %v637
    %v652 = vpack.c.bf16 %v640, %v638
    %v653 = vpack.c.bf16 %v643, %v641
    %v654 = vpack.c.bf16 %v644, %v642
    %v655 = vpack.c.bf16 %v647, %v645
    %v656 = vpack.c.bf16 %v648, %v646
    %v657 = vld [vmem:[#allocation8] sm:$0xff]
    %v658 = vld [vmem:[#allocation8 + $0x8] sm:$0xff]
    %v659 = vld [vmem:[#allocation8 + $0x10] sm:$0xff]
    %v660 = vld [vmem:[#allocation8 + $0x18] sm:$0xff]
    %v661 = vld [vmem:[#allocation8 + $0x20] sm:$0xff]
    %v662 = vld [vmem:[#allocation8 + $0x28] sm:$0xff]
    %v663 = vld [vmem:[#allocation8 + $0x30] sm:$0xff]
    %v664 = vld [vmem:[#allocation8 + $0x38] sm:$0xff]
    %v665 = vld [vmem:[#allocation8 + $0x40] sm:$0xff]
    %v666 = vld [vmem:[#allocation8 + $0x48] sm:$0xff]
    %v667 = vld [vmem:[#allocation8 + $0x50] sm:$0xff]
    %v668 = vld [vmem:[#allocation8 + $0x58] sm:$0xff]
    %v669 = vld [vmem:[#allocation8 + $0x60] sm:$0xff]
    %v670 = vld [vmem:[#allocation8 + $0x68] sm:$0xff]
    %v671 = vld [vmem:[#allocation8 + $0x70] sm:$0xff]
    %v672 = vld [vmem:[#allocation8 + $0x78] sm:$0xff]
    %v673 = vld [vmem:[#allocation8 + $0x80] sm:$0xff]
    %v674 = vld [vmem:[#allocation8 + $0x88] sm:$0xff]
    %v675 = vld [vmem:[#allocation8 + $0x90] sm:$0xff]
    %v676 = vld [vmem:[#allocation8 + $0x98] sm:$0xff]
    %v677 = vld [vmem:[#allocation8 + $0xa0] sm:$0xff]
    %v678 = vld [vmem:[#allocation8 + $0xa8] sm:$0xff]
    %v679 = vld [vmem:[#allocation8 + $0xb0] sm:$0xff]
    %v680 = vld [vmem:[#allocation8 + $0xb8] sm:$0xff]
    %v681 = vld [vmem:[#allocation8 + $0xc0] sm:$0xff]
    %v682 = vld [vmem:[#allocation8 + $0xc8] sm:$0xff]
    %v683 = vld [vmem:[#allocation8 + $0xd0] sm:$0xff]
    %v684 = vld [vmem:[#allocation8 + $0xd8] sm:$0xff]
    %v685 = vld [vmem:[#allocation8 + $0xe0] sm:$0xff]
    %v686 = vld [vmem:[#allocation8 + $0xe8] sm:$0xff]
    %v687 = vld [vmem:[#allocation8 + $0xf0] sm:$0xff]
    %v688 = vld [vmem:[#allocation8 + $0xf8] sm:$0xff]
    %v721 = vunpack.c.l.b16 %v657
    %v722 = vunpack.c.h.b16 %v657
    %v723 = vunpack.c.l.b16 %v658
    %v724 = vunpack.c.h.b16 %v658
    %v725 = vunpack.c.l.b16 %v659
    %v726 = vunpack.c.h.b16 %v659
    %v727 = vunpack.c.l.b16 %v660
    %v728 = vunpack.c.h.b16 %v660
    %v729 = vunpack.c.l.b16 %v661
    %v730 = vunpack.c.h.b16 %v661
    %v731 = vunpack.c.l.b16 %v662
    %v732 = vunpack.c.h.b16 %v662
    %v733 = vunpack.c.l.b16 %v663
    %v734 = vunpack.c.h.b16 %v663
    %v735 = vunpack.c.l.b16 %v664
    %v736 = vunpack.c.h.b16 %v664
    %v737 = vunpack.c.l.b16 %v665
    %v738 = vunpack.c.h.b16 %v665
    %v739 = vunpack.c.l.b16 %v666
    %v740 = vunpack.c.h.b16 %v666
    %v741 = vunpack.c.l.b16 %v667
    %v742 = vunpack.c.h.b16 %v667
    %v743 = vunpack.c.l.b16 %v668
    %v744 = vunpack.c.h.b16 %v668
    %v745 = vunpack.c.l.b16 %v669
    %v746 = vunpack.c.h.b16 %v669
    %v747 = vunpack.c.l.b16 %v670
    %v748 = vunpack.c.h.b16 %v670
    %v749 = vunpack.c.l.b16 %v671
    %v750 = vunpack.c.h.b16 %v671
    %v751 = vunpack.c.l.b16 %v672
    %v752 = vunpack.c.h.b16 %v672
    %v753 = vunpack.c.l.b16 %v673
    %v754 = vunpack.c.h.b16 %v673
    %v755 = vunpack.c.l.b16 %v674
    %v756 = vunpack.c.h.b16 %v674
    %v757 = vunpack.c.l.b16 %v675
    %v758 = vunpack.c.h.b16 %v675
    %v759 = vunpack.c.l.b16 %v676
    %v760 = vunpack.c.h.b16 %v676
    %v761 = vunpack.c.l.b16 %v677
    %v762 = vunpack.c.h.b16 %v677
    %v763 = vunpack.c.l.b16 %v678
    %v764 = vunpack.c.h.b16 %v678
    %v765 = vunpack.c.l.b16 %v679
    %v766 = vunpack.c.h.b16 %v679
    %v767 = vunpack.c.l.b16 %v680
    %v768 = vunpack.c.h.b16 %v680
    %v769 = vunpack.c.l.b16 %v681
    %v770 = vunpack.c.h.b16 %v681
    %v771 = vunpack.c.l.b16 %v682
    %v772 = vunpack.c.h.b16 %v682
    %v773 = vunpack.c.l.b16 %v683
    %v774 = vunpack.c.h.b16 %v683
    %v775 = vunpack.c.l.b16 %v684
    %v776 = vunpack.c.h.b16 %v684
    %v777 = vunpack.c.l.b16 %v685
    %v778 = vunpack.c.h.b16 %v685
    %v779 = vunpack.c.l.b16 %v686
    %v780 = vunpack.c.h.b16 %v686
    %v781 = vunpack.c.l.b16 %v687
    %v782 = vunpack.c.h.b16 %v687
    %v783 = vunpack.c.l.b16 %v688
    %v784 = vunpack.c.h.b16 %v688
    %v785 = vpack.c.b16 %v723, %v721
    %v786 = vpack.c.b16 %v724, %v722
    %v787 = vpack.c.b16 %v727, %v725
    %v788 = vpack.c.b16 %v728, %v726
    %v789 = vpack.c.b16 %v731, %v729
    %v790 = vpack.c.b16 %v732, %v730
    %v791 = vpack.c.b16 %v735, %v733
    %v792 = vpack.c.b16 %v736, %v734
    %v793 = vpack.c.b16 %v739, %v737
    %v794 = vpack.c.b16 %v740, %v738
    %v795 = vpack.c.b16 %v743, %v741
    %v796 = vpack.c.b16 %v744, %v742
    %v797 = vpack.c.b16 %v747, %v745
    %v798 = vpack.c.b16 %v748, %v746
    %v799 = vpack.c.b16 %v751, %v749
    %v800 = vpack.c.b16 %v752, %v750
    %v801 = vpack.c.b16 %v755, %v753
    %v802 = vpack.c.b16 %v756, %v754
    %v803 = vpack.c.b16 %v759, %v757
    %v804 = vpack.c.b16 %v760, %v758
    %v805 = vpack.c.b16 %v763, %v761
    %v806 = vpack.c.b16 %v764, %v762
    %v807 = vpack.c.b16 %v767, %v765
    %v808 = vpack.c.b16 %v768, %v766
    %v809 = vpack.c.b16 %v771, %v769
    %v810 = vpack.c.b16 %v772, %v770
    %v811 = vpack.c.b16 %v775, %v773
    %v812 = vpack.c.b16 %v776, %v774
    %v813 = vpack.c.b16 %v779, %v777
    %v814 = vpack.c.b16 %v780, %v778
    %v815 = vpack.c.b16 %v783, %v781
    %v816 = vpack.c.b16 %v784, %v782
    %849 = vmatpush.bf16.msra.mxu0 %v799
    %850 = vmatpush.bf16.msra.mxu0 %v797
    %851 = vmatpush.bf16.msra.mxu0 %v795
    %852 = vmatpush.bf16.msra.mxu0 %v793
    %853 = vmatpush.bf16.msra.mxu0 %v791
    %854 = vmatpush.bf16.msra.mxu0 %v789
    %855 = vmatpush.bf16.msra.mxu0 %v787
    %856 = vmatpush.bf16.msra.mxu0 %v785
    %857 = vmatmul.bf16.gmra.mxu0 %v649
    %v858 = vpop.f32.mrf.mxu0
    %v859 = vadd.f32 0.0, %v858
    %v860 = vpop.f32.mrf.mxu0
    %v861 = vadd.f32 0.0, %v860
    %862 = vmatmul.bf16.gmra.mxu0 %v651
    %v863 = vpop.f32.mrf.mxu0
    %v864 = vadd.f32 0.0, %v863
    %v865 = vpop.f32.mrf.mxu0
    %v866 = vadd.f32 0.0, %v865
    %867 = vmatmul.bf16.gmra.mxu0 %v653
    %v868 = vpop.f32.mrf.mxu0
    %v869 = vadd.f32 0.0, %v868
    %v870 = vpop.f32.mrf.mxu0
    %v871 = vadd.f32 0.0, %v870
    %872 = vmatmul.bf16.gmra.mxu0 %v655
    %v873 = vpop.f32.mrf.mxu0
    %v874 = vadd.f32 0.0, %v873
    %v875 = vpop.f32.mrf.mxu0
    %v876 = vadd.f32 0.0, %v875
    %877 = vdwg.mxu0
    %878 = vmatpush.bf16.msra.mxu0 %v815
    %879 = vmatpush.bf16.msra.mxu0 %v813
    %880 = vmatpush.bf16.msra.mxu0 %v811
    %881 = vmatpush.bf16.msra.mxu0 %v809
    %882 = vmatpush.bf16.msra.mxu0 %v807
    %883 = vmatpush.bf16.msra.mxu0 %v805
    %884 = vmatpush.bf16.msra.mxu0 %v803
    %885 = vmatpush.bf16.msra.mxu0 %v801
    %886 = vmatmul.bf16.gmra.mxu0 %v650
    %v887 = vpop.f32.mrf.mxu0
    %v888 = vadd.f32 %v859, %v887
    %v889 = vpop.f32.mrf.mxu0
    %v890 = vadd.f32 %v861, %v889
    %891 = vmatmul.bf16.gmra.mxu0 %v652
    %v892 = vpop.f32.mrf.mxu0
    %v893 = vadd.f32 %v864, %v892
    %v894 = vpop.f32.mrf.mxu0
    %v895 = vadd.f32 %v866, %v894
    %896 = vmatmul.bf16.gmra.mxu0 %v654
    %v897 = vpop.f32.mrf.mxu0
    %v898 = vadd.f32 %v869, %v897
    %v899 = vpop.f32.mrf.mxu0
    %v900 = vadd.f32 %v871, %v899
    %901 = vmatmul.bf16.gmra.mxu0 %v656
    %v902 = vpop.f32.mrf.mxu0
    %v903 = vadd.f32 %v874, %v902
    %v904 = vpop.f32.mrf.mxu0
    %v905 = vadd.f32 %v876, %v904
    %906 = vdwg.mxu0
    %907 = vmatpush.bf16.msra.mxu0 %v800
    %908 = vmatpush.bf16.msra.mxu0 %v798
    %909 = vmatpush.bf16.msra.mxu0 %v796
    %910 = vmatpush.bf16.msra.mxu0 %v794
    %911 = vmatpush.bf16.msra.mxu0 %v792
    %912 = vmatpush.bf16.msra.mxu0 %v790
    %913 = vmatpush.bf16.msra.mxu0 %v788
    %914 = vmatpush.bf16.msra.mxu0 %v786
    %915 = vmatmul.bf16.gmra.mxu0 %v649
    %v916 = vpop.f32.mrf.mxu0
    %v917 = vadd.f32 0.0, %v916
    %v918 = vpop.f32.mrf.mxu0
    %v919 = vadd.f32 0.0, %v918
    %920 = vmatmul.bf16.gmra.mxu0 %v651
    %v921 = vpop.f32.mrf.mxu0
    %v922 = vadd.f32 0.0, %v921
    %v923 = vpop.f32.mrf.mxu0
    %v924 = vadd.f32 0.0, %v923
    %925 = vmatmul.bf16.gmra.mxu0 %v653
    %v926 = vpop.f32.mrf.mxu0
    %v927 = vadd.f32 0.0, %v926
    %v928 = vpop.f32.mrf.mxu0
    %v929 = vadd.f32 0.0, %v928
    %930 = vmatmul.bf16.gmra.mxu0 %v655
    %v931 = vpop.f32.mrf.mxu0
    %v932 = vadd.f32 0.0, %v931
    %v933 = vpop.f32.mrf.mxu0
    %v934 = vadd.f32 0.0, %v933
    %935 = vdwg.mxu0
    %936 = vmatpush.bf16.msra.mxu0 %v816
    %937 = vmatpush.bf16.msra.mxu0 %v814
    %938 = vmatpush.bf16.msra.mxu0 %v812
    %939 = vmatpush.bf16.msra.mxu0 %v810
    %940 = vmatpush.bf16.msra.mxu0 %v808
    %941 = vmatpush.bf16.msra.mxu0 %v806
    %942 = vmatpush.bf16.msra.mxu0 %v804
    %943 = vmatpush.bf16.msra.mxu0 %v802
    %944 = vmatmul.bf16.gmra.mxu0 %v650
    %v945 = vpop.f32.mrf.mxu0
    %v946 = vadd.f32 %v917, %v945
    %v947 = vpop.f32.mrf.mxu0
    %v948 = vadd.f32 %v919, %v947
    %949 = vmatmul.bf16.gmra.mxu0 %v652
    %v950 = vpop.f32.mrf.mxu0
    %v951 = vadd.f32 %v922, %v950
    %v952 = vpop.f32.mrf.mxu0
    %v953 = vadd.f32 %v924, %v952
    %954 = vmatmul.bf16.gmra.mxu0 %v654
    %v955 = vpop.f32.mrf.mxu0
    %v956 = vadd.f32 %v927, %v955
    %v957 = vpop.f32.mrf.mxu0
    %v958 = vadd.f32 %v929, %v957
    %959 = vmatmul.bf16.gmra.mxu0 %v656
    %v960 = vpop.f32.mrf.mxu0
    %v961 = vadd.f32 %v932, %v960
    %v962 = vpop.f32.mrf.mxu0
    %v963 = vadd.f32 %v934, %v962
    %964 = vdwg.mxu0
    %v965 = vld [vmem:[%s5] sm:$0x3]
    %v966 = vld [vmem:[#allocation10] sm:$0x3]
    %v967 = vadd.f32 %v888, %v890
    %v968 = vadd.f32 %v967, %v893
    %v969 = vadd.f32 %v968, %v895
    %v970 = vadd.f32 %v969, %v898
    %v971 = vadd.f32 %v970, %v900
    %v972 = vadd.f32 %v971, %v903
    %v973 = vadd.f32 %v972, %v905
    %v974 = vrot.slane %v973, 4
    %v975 = vadd.f32 %v973, %v974
    %v976 = vrot.slane %v975, 2
    %v977 = vadd.f32 %v975, %v976
    %v978 = vrot.slane %v977, 1
    %v979 = vadd.f32 %v977, %v978
    %v980 = vadd.f32 %v946, %v948
    %v981 = vadd.f32 %v980, %v951
    %v982 = vadd.f32 %v981, %v953
    %v983 = vadd.f32 %v982, %v956
    %v984 = vadd.f32 %v983, %v958
    %v985 = vadd.f32 %v984, %v961
    %v986 = vadd.f32 %v985, %v963
    %v987 = vrot.slane %v986, 4
    %v988 = vadd.f32 %v986, %v987
    %v989 = vrot.slane %v988, 2
    %v990 = vadd.f32 %v988, %v989
    %v991 = vrot.slane %v990, 1
    %v992 = vadd.f32 %v990, %v991
    %v993 = vmul.f32 %v888, %v888
    %v994 = vmul.f32 %v946, %v946
    %v995 = vmul.f32 %v890, %v890
    %v996 = vmul.f32 %v948, %v948
    %v997 = vmul.f32 %v893, %v893
    %v998 = vmul.f32 %v951, %v951
    %v999 = vmul.f32 %v895, %v895
    %v1000 = vmul.f32 %v953, %v953
    %v1001 = vmul.f32 %v898, %v898
    %v1002 = vmul.f32 %v956, %v956
    %v1003 = vmul.f32 %v900, %v900
    %v1004 = vmul.f32 %v958, %v958
    %v1005 = vmul.f32 %v903, %v903
    %v1006 = vmul.f32 %v961, %v961
    %v1007 = vmul.f32 %v905, %v905
    %v1008 = vmul.f32 %v963, %v963
    %v1009 = vadd.f32 %v993, %v995
    %v1010 = vadd.f32 %v1009, %v997
    %v1011 = vadd.f32 %v1010, %v999
    %v1012 = vadd.f32 %v1011, %v1001
    %v1013 = vadd.f32 %v1012, %v1003
    %v1014 = vadd.f32 %v1013, %v1005
    %v1015 = vadd.f32 %v1014, %v1007
    %v1016 = vrot.slane %v1015, 4
    %v1017 = vadd.f32 %v1015, %v1016
    %v1018 = vrot.slane %v1017, 2
    %v1019 = vadd.f32 %v1017, %v1018
    %v1020 = vrot.slane %v1019, 1
    %v1021 = vadd.f32 %v1019, %v1020
    %v1022 = vadd.f32 %v994, %v996
    %v1023 = vadd.f32 %v1022, %v998
    %v1024 = vadd.f32 %v1023, %v1000
    %v1025 = vadd.f32 %v1024, %v1002
    %v1026 = vadd.f32 %v1025, %v1004
    %v1027 = vadd.f32 %v1026, %v1006
    %v1028 = vadd.f32 %v1027, %v1008
    %v1029 = vrot.slane %v1028, 4
    %v1030 = vadd.f32 %v1028, %v1029
    %v1031 = vrot.slane %v1030, 2
    %v1032 = vadd.f32 %v1030, %v1031
    %v1033 = vrot.slane %v1032, 1
    %v1034 = vadd.f32 %v1032, %v1033
    %v1035 = vmul.f32 %v979, 0.015625
    %v1036 = vmul.f32 %v992, 0.015625
    %v1037 = vmul.f32 %v1021, 0.015625
    %v1038 = vmul.f32 %v1034, 0.015625
    %v1039 = vmul.f32 %v1035, %v1035
    %v1040 = vmul.f32 %v1036, %v1036
    %v1041 = vsub.f32 %v1037, %v1039
    %v1042 = vsub.f32 %v1038, %v1040
    %v1043 = vadd.f32 %v1041, 1e-05
    %v1044 = vadd.f32 %v1042, 1e-05
    %v1045 = vrsqrt.pop %v1043
    %v1046 = vmul.f32 %v1045, %v1043
    %v1047 = vmul.f32 %v1046, %v1045
    %v1048 = vmul.f32 0.5, %v1047
    %v1049 = vsub.f32 1.5, %v1048
    %v1050 = vmul.f32 %v1045, %v1049
    %vm1051 = vweird.f32 %v1043
    %vm1052 = vweird.f32 %v1045
    %vm1053 = vmor %vm1051, %vm1052
    %v1054 = vsel %vm1053, %v1045, %v1050
    %v1055 = vrsqrt.pop %v1044
    %v1056 = vmul.f32 %v1055, %v1044
    %v1057 = vmul.f32 %v1056, %v1055
    %v1058 = vmul.f32 0.5, %v1057
    %v1059 = vsub.f32 1.5, %v1058
    %v1060 = vmul.f32 %v1055, %v1059
    %vm1061 = vweird.f32 %v1044
    %vm1062 = vweird.f32 %v1055
    %vm1063 = vmor %vm1061, %vm1062
    %v1064 = vsel %vm1063, %v1055, %v1060
    %v1067 = vrot.slane %v1064, 7
    %v1068 = vsel %vm579, %v1054, %v1067
    %v1070 = vmul.f32 %v965, %v1068
    %v1072 = vperm.slane %v1070, 0
    %v1073 = vperm.slane %v1070, 1
    %v1076 = vmul.f32 %v1035, %v1072
    %v1077 = vmul.f32 %v1036, %v1073
    %v1080 = vrot.slane %v1077, 7
    %v1081 = vsel %vm579, %v1076, %v1080
    %v1083 = vsub.f32 %v966, %v1081
    %v1084 = vmul.f32 %v888, %v1072
    %v1085 = vmul.f32 %v946, %v1073
    %v1086 = vmul.f32 %v890, %v1072
    %v1087 = vmul.f32 %v948, %v1073
    %v1088 = vmul.f32 %v893, %v1072
    %v1089 = vmul.f32 %v951, %v1073
    %v1090 = vmul.f32 %v895, %v1072
    %v1091 = vmul.f32 %v953, %v1073
    %v1092 = vmul.f32 %v898, %v1072
    %v1093 = vmul.f32 %v956, %v1073
    %v1094 = vmul.f32 %v900, %v1072
    %v1095 = vmul.f32 %v958, %v1073
    %v1096 = vmul.f32 %v903, %v1072
    %v1097 = vmul.f32 %v961, %v1073
    %v1098 = vmul.f32 %v905, %v1072
    %v1099 = vmul.f32 %v963, %v1073
    %v1101 = vperm.slane %v1083, 0
    %v1102 = vperm.slane %v1083, 1
    %v1105 = vadd.f32 %v1084, %v1101
    %v1106 = vadd.f32 %v1085, %v1102
    %v1107 = vadd.f32 %v1086, %v1101
    %v1108 = vadd.f32 %v1087, %v1102
    %v1109 = vadd.f32 %v1088, %v1101
    %v1110 = vadd.f32 %v1089, %v1102
    %v1111 = vadd.f32 %v1090, %v1101
    %v1112 = vadd.f32 %v1091, %v1102
    %v1113 = vadd.f32 %v1092, %v1101
    %v1114 = vadd.f32 %v1093, %v1102
    %v1115 = vadd.f32 %v1094, %v1101
    %v1116 = vadd.f32 %v1095, %v1102
    %v1117 = vadd.f32 %v1096, %v1101
    %v1118 = vadd.f32 %v1097, %v1102
    %v1119 = vadd.f32 %v1098, %v1101
    %v1120 = vadd.f32 %v1099, %v1102
    %v1121 = vmax.f32 %v1105, 0.0
    %v1122 = vmax.f32 %v1106, 0.0
    %v1123 = vmax.f32 %v1107, 0.0
    %v1124 = vmax.f32 %v1108, 0.0
    %v1125 = vmax.f32 %v1109, 0.0
    %v1126 = vmax.f32 %v1110, 0.0
    %v1127 = vmax.f32 %v1111, 0.0
    %v1128 = vmax.f32 %v1112, 0.0
    %v1129 = vmax.f32 %v1113, 0.0
    %v1130 = vmax.f32 %v1114, 0.0
    %v1131 = vmax.f32 %v1115, 0.0
    %v1132 = vmax.f32 %v1116, 0.0
    %v1133 = vmax.f32 %v1117, 0.0
    %v1134 = vmax.f32 %v1118, 0.0
    %v1135 = vmax.f32 %v1119, 0.0
    %v1136 = vmax.f32 %v1120, 0.0
    %v1137 = vpack.c.bf16 %v1123, %v1121
    %v1138 = vpack.c.bf16 %v1124, %v1122
    %v1139 = vpack.c.bf16 %v1127, %v1125
    %v1140 = vpack.c.bf16 %v1128, %v1126
    %v1141 = vpack.c.bf16 %v1131, %v1129
    %v1142 = vpack.c.bf16 %v1132, %v1130
    %v1143 = vpack.c.bf16 %v1135, %v1133
    %v1144 = vpack.c.bf16 %v1136, %v1134
    %v1145 = vld [vmem:[#allocation11] sm:$0xf]
    %v1146 = vld [vmem:[#allocation11 + $0x4] sm:$0xf]
    %v1147 = vld [vmem:[#allocation11 + $0x8] sm:$0xf]
    %v1148 = vld [vmem:[#allocation11 + $0xc] sm:$0xf]
    %v1149 = vld [vmem:[#allocation11 + $0x10] sm:$0xf]
    %v1150 = vld [vmem:[#allocation11 + $0x14] sm:$0xf]
    %v1151 = vld [vmem:[#allocation11 + $0x18] sm:$0xf]
    %v1152 = vld [vmem:[#allocation11 + $0x1c] sm:$0xf]
    %v1153 = vld [vmem:[#allocation11 + $0x20] sm:$0xf]
    %v1154 = vld [vmem:[#allocation11 + $0x24] sm:$0xf]
    %v1155 = vld [vmem:[#allocation11 + $0x28] sm:$0xf]
    %v1156 = vld [vmem:[#allocation11 + $0x2c] sm:$0xf]
    %v1157 = vld [vmem:[#allocation11 + $0x30] sm:$0xf]
    %v1158 = vld [vmem:[#allocation11 + $0x34] sm:$0xf]
    %v1159 = vld [vmem:[#allocation11 + $0x38] sm:$0xf]
    %v1160 = vld [vmem:[#allocation11 + $0x3c] sm:$0xf]
    %v1161 = vld [vmem:[#allocation11 + $0x40] sm:$0xf]
    %v1162 = vld [vmem:[#allocation11 + $0x44] sm:$0xf]
    %v1163 = vld [vmem:[#allocation11 + $0x48] sm:$0xf]
    %v1164 = vld [vmem:[#allocation11 + $0x4c] sm:$0xf]
    %v1165 = vld [vmem:[#allocation11 + $0x50] sm:$0xf]
    %v1166 = vld [vmem:[#allocation11 + $0x54] sm:$0xf]
    %v1167 = vld [vmem:[#allocation11 + $0x58] sm:$0xf]
    %v1168 = vld [vmem:[#allocation11 + $0x5c] sm:$0xf]
    %v1169 = vld [vmem:[#allocation11 + $0x60] sm:$0xf]
    %v1170 = vld [vmem:[#allocation11 + $0x64] sm:$0xf]
    %v1171 = vld [vmem:[#allocation11 + $0x68] sm:$0xf]
    %v1172 = vld [vmem:[#allocation11 + $0x6c] sm:$0xf]
    %v1173 = vld [vmem:[#allocation11 + $0x70] sm:$0xf]
    %v1174 = vld [vmem:[#allocation11 + $0x74] sm:$0xf]
    %v1175 = vld [vmem:[#allocation11 + $0x78] sm:$0xf]
    %v1176 = vld [vmem:[#allocation11 + $0x7c] sm:$0xf]
    %v1209 = vunpack.c.l.b16 %v1145
    %v1210 = vunpack.c.l.b16 %v1146
    %v1211 = vunpack.c.l.b16 %v1147
    %v1212 = vunpack.c.l.b16 %v1148
    %v1213 = vunpack.c.l.b16 %v1149
    %v1214 = vunpack.c.l.b16 %v1150
    %v1215 = vunpack.c.l.b16 %v1151
    %v1216 = vunpack.c.l.b16 %v1152
    %v1217 = vunpack.c.l.b16 %v1153
    %v1218 = vunpack.c.l.b16 %v1154
    %v1219 = vunpack.c.l.b16 %v1155
    %v1220 = vunpack.c.l.b16 %v1156
    %v1221 = vunpack.c.l.b16 %v1157
    %v1222 = vunpack.c.l.b16 %v1158
    %v1223 = vunpack.c.l.b16 %v1159
    %v1224 = vunpack.c.l.b16 %v1160
    %v1225 = vunpack.c.l.b16 %v1161
    %v1226 = vunpack.c.l.b16 %v1162
    %v1227 = vunpack.c.l.b16 %v1163
    %v1228 = vunpack.c.l.b16 %v1164
    %v1229 = vunpack.c.l.b16 %v1165
    %v1230 = vunpack.c.l.b16 %v1166
    %v1231 = vunpack.c.l.b16 %v1167
    %v1232 = vunpack.c.l.b16 %v1168
    %v1233 = vunpack.c.l.b16 %v1169
    %v1234 = vunpack.c.l.b16 %v1170
    %v1235 = vunpack.c.l.b16 %v1171
    %v1236 = vunpack.c.l.b16 %v1172
    %v1237 = vunpack.c.l.b16 %v1173
    %v1238 = vunpack.c.l.b16 %v1174
    %v1239 = vunpack.c.l.b16 %v1175
    %v1240 = vunpack.c.l.b16 %v1176
    %v1241 = vpack.c.b16 %v1210, %v1209
    %v1242 = vpack.c.b16 %v1212, %v1211
    %v1243 = vpack.c.b16 %v1214, %v1213
    %v1244 = vpack.c.b16 %v1216, %v1215
    %v1245 = vpack.c.b16 %v1218, %v1217
    %v1246 = vpack.c.b16 %v1220, %v1219
    %v1247 = vpack.c.b16 %v1222, %v1221
    %v1248 = vpack.c.b16 %v1224, %v1223
    %v1249 = vpack.c.b16 %v1226, %v1225
    %v1250 = vpack.c.b16 %v1228, %v1227
    %v1251 = vpack.c.b16 %v1230, %v1229
    %v1252 = vpack.c.b16 %v1232, %v1231
    %v1253 = vpack.c.b16 %v1234, %v1233
    %v1254 = vpack.c.b16 %v1236, %v1235
    %v1255 = vpack.c.b16 %v1238, %v1237
    %v1256 = vpack.c.b16 %v1240, %v1239
    %1273 = vmatpush.bf16.msra.mxu0 %v1248
    %1274 = vmatpush.bf16.msra.mxu0 %v1247
    %1275 = vmatpush.bf16.msra.mxu0 %v1246
    %1276 = vmatpush.bf16.msra.mxu0 %v1245
    %1277 = vmatpush.bf16.msra.mxu0 %v1244
    %1278 = vmatpush.bf16.msra.mxu0 %v1243
    %1279 = vmatpush.bf16.msra.mxu0 %v1242
    %1280 = vmatpush.bf16.msra.mxu0 %v1241
    %1281 = vmatmul.bf16.gmra.mxu0 %v1137
    %v1282 = vpop.f32.mrf.mxu0
    %v1283 = vadd.f32 0.0, %v1282
    %v1284 = vpop.f32.mrf.mxu0
    %v1285 = vadd.f32 0.0, %v1284
    %1286 = vmatmul.bf16.gmra.mxu0 %v1139
    %v1287 = vpop.f32.mrf.mxu0
    %v1288 = vadd.f32 0.0, %v1287
    %v1289 = vpop.f32.mrf.mxu0
    %v1290 = vadd.f32 0.0, %v1289
    %1291 = vmatmul.bf16.gmra.mxu0 %v1141
    %v1292 = vpop.f32.mrf.mxu0
    %v1293 = vadd.f32 0.0, %v1292
    %v1294 = vpop.f32.mrf.mxu0
    %v1295 = vadd.f32 0.0, %v1294
    %1296 = vmatmul.bf16.gmra.mxu0 %v1143
    %v1297 = vpop.f32.mrf.mxu0
    %v1298 = vadd.f32 0.0, %v1297
    %v1299 = vpop.f32.mrf.mxu0
    %v1300 = vadd.f32 0.0, %v1299
    %1301 = vdwg.mxu0
    %1302 = vmatpush.bf16.msra.mxu0 %v1256
    %1303 = vmatpush.bf16.msra.mxu0 %v1255
    %1304 = vmatpush.bf16.msra.mxu0 %v1254
    %1305 = vmatpush.bf16.msra.mxu0 %v1253
    %1306 = vmatpush.bf16.msra.mxu0 %v1252
    %1307 = vmatpush.bf16.msra.mxu0 %v1251
    %1308 = vmatpush.bf16.msra.mxu0 %v1250
    %1309 = vmatpush.bf16.msra.mxu0 %v1249
    %1310 = vmatmul.bf16.gmra.mxu0 %v1138
    %v1311 = vpop.f32.mrf.mxu0
    %v1312 = vadd.f32 %v1283, %v1311
    %v1313 = vpop.f32.mrf.mxu0
    %v1314 = vadd.f32 %v1285, %v1313
    %1315 = vmatmul.bf16.gmra.mxu0 %v1140
    %v1316 = vpop.f32.mrf.mxu0
    %v1317 = vadd.f32 %v1288, %v1316
    %v1318 = vpop.f32.mrf.mxu0
    %v1319 = vadd.f32 %v1290, %v1318
    %1320 = vmatmul.bf16.gmra.mxu0 %v1142
    %v1321 = vpop.f32.mrf.mxu0
    %v1322 = vadd.f32 %v1293, %v1321
    %v1323 = vpop.f32.mrf.mxu0
    %v1324 = vadd.f32 %v1295, %v1323
    %1325 = vmatmul.bf16.gmra.mxu0 %v1144
    %v1326 = vpop.f32.mrf.mxu0
    %v1327 = vadd.f32 %v1298, %v1326
    %v1328 = vpop.f32.mrf.mxu0
    %v1329 = vadd.f32 %v1300, %v1328
    %1330 = vdwg.mxu0
    %1331 = vst [vmem:[#allocation13] sm:$0xff] %v1312
    %1332 = vst [vmem:[#allocation13 + $0x8] sm:$0xff] %v1314
    %1333 = vst [vmem:[#allocation13 + $0x10] sm:$0xff] %v1317
    %1334 = vst [vmem:[#allocation13 + $0x18] sm:$0xff] %v1319
    %1335 = vst [vmem:[#allocation13 + $0x20] sm:$0xff] %v1322
    %1336 = vst [vmem:[#allocation13 + $0x28] sm:$0xff] %v1324
    %1337 = vst [vmem:[#allocation13 + $0x30] sm:$0xff] %v1327
    %1338 = vst [vmem:[#allocation13 + $0x38] sm:$0xff] %v1329
    // Predicated region
    $region58: #{tpu_custom_call.1} parent=1 // pred_check
      _
    $region59: #{tpu_custom_call.1} parent=1 // pred_check_branch
      %1340 = sbr.rel (0) target = $region61
    $region60: #{tpu_custom_call.1} parent=1 // pred_region
      %1342 = vsyncadd [#allocation4], 0
      %s1343 = sshll.u32 [#allocation13], 4
      %s1344 = int_to_ptr.vmem [resolvable:$true] %s1343
      %s1345 = sshll.u32 %s8, 4
      %s1346 = int_to_ptr.hbm [resolvable:$true] %s1345
      %1351 = dma.vmem_to_hbm [thread:$0]  %s1344, 1024, %s1346, [#allocation4], 128, 128, 8
    $region61: #{tpu_custom_call.1} parent=1 // pred_fallthru
      _
    // Predicated region
    $region62: #{tpu_custom_call.1} parent=1 // pred_check
      _
    $region63: #{tpu_custom_call.1} parent=1 // pred_check_branch
      %1353 = sbr.rel (0) target = $region65
    $region64: #{tpu_custom_call.1} parent=1 // pred_region
      %1355 = dma.done [#allocation4], 1024
    $region65: #{tpu_custom_call.1} parent=1 // pred_fallthru
      _
    %1356 = vsyncpa [#allocation3], 1
    %1357 = vsyncpa [#allocation6], 1
    %1358 = vsyncpa [#allocation9], 1
    %1359 = vsyncpa [#allocation12], 1
    %1360 = vsyncpa [#allocation4], 1

</llo_original>
